<compile_context>
chip_gen: v5e
topology: v5e:2x2
jax: 0.10.0
libtpu: 0.0.40
codegen_flags: <defaults>
</compile_context>

<pallas_src>
import functools
import math

import jax
import jax.numpy as jnp
from jax.experimental import pallas as pl
from jax.experimental.pallas import tpu as pltpu


# --------------------------------------------------------------------------
# Kernel
# --------------------------------------------------------------------------
def _ssd_kernel(x_ref, y_ref, o_ref, *, tile_w, tiles_per_shard, m_fold,
                need_mask, panel_w, n_acc):
    """Accumulate lane-parallel partial sums of squared differences.

    Grid: (shard, row_tile, feature_tile).  Axes 0/1 are 'parallel', axis 2 is
    the feature reduction; the output block index is constant along axis 2, so
    the (1, row_tile, lanes) output block stays resident in VMEM and acts as
    the accumulator.
    """
    k = pl.program_id(2)

    @pl.when(k == 0)
    def _init():
        o_ref[...] = jnp.zeros_like(o_ref)

    row_tile = x_ref.shape[0]
    lanes = o_ref.shape[-1]          # 128, or the full width when m_fold < 128

    # Static panel schedule covering [0, tile_w).  Panels are small enough that
    # the f32 temporaries of one panel stay in a few vregs (no VMEM spills).
    panels = []
    start = 0
    while start < tile_w:
        w = min(panel_w, tile_w - start)
        panels.append((start, w))
        start += w

    def accumulate(masked, base):
        # Independent accumulator chains break the loop-carried VALU dep chain.
        accs = [jnp.zeros((row_tile, lanes), jnp.float32) for _ in range(n_acc)]
        j = 0
        for p0, w in panels:
            # Native-dtype load of a small panel, upcast on the VPU.
            xg = x_ref[:, p0:p0 + w].astype(jnp.float32)
            yg = y_ref[:, p0:p0 + w].astype(jnp.float32)
            d = xg - yg
            d2 = d * d
            if masked:
                # Zero contributions from logical columns past the true width
                # (partial tail tile and fully-clamped redundant tiles).
                col = jax.lax.broadcasted_iota(jnp.int32, (row_tile, w), 1)
                d2 = jnp.where(col + (base + p0) < m_fold, d2, jnp.float32(0.0))
            if w <= lanes:
                accs[j % n_acc] = accs[j % n_acc] + d2
                j += 1
            else:
                # Fold the panel's 128-wide lane groups (pure VPU adds on
                # aligned vreg slices; no cross-lane XLU work in the hot loop).
                for g in range(w // lanes):
                    accs[j % n_acc] = (accs[j % n_acc]
                                       + d2[:, g * lanes:(g + 1) * lanes])
                    j += 1
        tot = accs[0]
        for a in accs[1:]:
            tot = tot + a
        return tot

    if need_mask:
        s = pl.program_id(0)
        base = (s * tiles_per_shard + k) * tile_w

        # Mask gating: interior tiles take the unmasked fast path; only the
        # tail / clamped tiles pay for iota + compare + select.
        @pl.when(base + tile_w <= m_fold)
        def _interior():
            o_ref[...] += accumulate(False, 0)[None]

        @pl.when(base + tile_w > m_fold)
        def _tail():
            o_ref[...] += accumulate(True, base)[None]
    else:
        o_ref[...] += accumulate(False, 0)[None]


# --------------------------------------------------------------------------
# Wrapper helpers
# --------------------------------------------------------------------------
def _choose_fold(n, m, sublanes):
    """Smallest r with (n*r) % sublanes == 0, m % r == 0 and m//r lane-dense.

    `sublanes` is the packed sublane count of the native dtype (8 for f32,
    16 for bf16/f16, 32 for i8/u8) so narrow-dtype loads fill every sublane.
    """
    reqs = [sublanes] + ([8] if sublanes != 8 else [])
    for req in reqs:
        base = req // math.gcd(n, req)
        for t in range(1, req + 1):
            r = base * t
            if m % r == 0 and m // r >= 128:
                return r
    # Tiny-feature fallback: still try to fill sublanes, else no fold.
    for req in reqs:
        base = req // math.gcd(n, req)
        if m % base == 0:
            return base
    return 1


def _vmem_budget():
    """(scoped vmem_limit_bytes, double-buffered-input budget), per chip gen."""
    try:
        phys = int(pltpu.get_tpu_info().vmem_capacity_bytes)
    except Exception:
        phys = 64 * 1024 * 1024                      # conservative fallback
    if phys >= 128 * 1024 * 1024:                    # v5e / v6e (128 MiB)
        return 96 * 1024 * 1024, 64 * 1024 * 1024
    return 40 * 1024 * 1024, 24 * 1024 * 1024        # v7x-class (64 MiB)


def _num_tensorcores():
    """Best-effort TensorCores-per-device; 1 is always a safe answer."""
    try:
        kind = jax.devices()[0].device_kind.lower()
    except Exception:
        return 1
    if "lite" in kind or "v5e" in kind or "v6e" in kind:
        return 1
    if "v7" in kind or "v4" in kind or "v5p" in kind:
        return 2
    return 1


# --------------------------------------------------------------------------
# Public entry point
# --------------------------------------------------------------------------
def psnr_pallas(x, y, *, value_range=1.0, epsilon=1e-8):
    """x, y: (N, *) arrays (any trailing shape, any numeric dtype).
    Returns scalar float32 batch-mean PSNR (PyTorch PSNR(reduction='mean'))."""
    assert x.shape == y.shape
    n = x.shape[0]
    m = math.prod(x.shape[1:]) if len(x.shape) > 1 else 1

    isx = jnp.dtype(x.dtype).itemsize
    isy = jnp.dtype(y.dtype).itemsize
    # Packed sublanes of the narrowest input dtype (f32:8, bf16:16, i8/u8:32).
    sublanes = 8 * max(1, 4 // max(1, min(isx, isy, 4)))

    # Sublane folding: view (N, M) as (N*r, M/r) so blocks fill packed sublanes.
    r = _choose_fold(n, m, sublanes)
    rows = n * r
    m_fold = m // r
    xf = x.reshape(rows, m_fold)   # pure view, native dtype kept (no HBM copy)
    yf = y.reshape(rows, m_fold)

    # Row tiling keeps the per-panel register footprint bounded for large N.
    ROW_TILE_MAX = 32
    if rows <= ROW_TILE_MAX:
        row_tile, n_row_tiles = rows, 1
    else:
        row_tile = ROW_TILE_MAX
        n_row_tiles = -(-rows // row_tile)
    padded_rows = n_row_tiles * row_tile

    # Panel width: one panel's f32 temporaries stay within a few vregs.
    panel_w = max(128, min(1024, ((4096 // max(row_tile, 1)) // 128) * 128))
    MAX_PANELS = 64                 # bounds the statically unrolled inner loop

    # Tile width: sized from double-buffered NATIVE-dtype inputs only (the
    # streamed panels keep f32 temporaries in registers), generation-aware.
    vmem_limit, input_budget = _vmem_budget()
    bytes_per_col = row_tile * (isx + isy) * 2      # x & y, double-buffered
    cap_cols = max(128, input_budget // max(bytes_per_col, 1))
    if m_fold >= 128:
        tile_w = min(m_fold, MAX_PANELS * panel_w, cap_cols)
        tile_w = max(128, (tile_w // 128) * 128)    # lane-group multiple
        lanes_out = 128
    else:
        tile_w = m_fold                              # full-dim block, no 128 rule
        lanes_out = m_fold

    n_tiles = -(-m_fold // tile_w)
    n_cores = _num_tensorcores()
    n_shards = 2 if (n_cores >= 2 and n_tiles >= 2) else 1   # megacore only
    tiles_per_shard = -(-n_tiles // n_shards)
    need_mask = (n_shards * tiles_per_shard * tile_w) != m_fold
    n_acc = min(4, max(1, tile_w // 128))

    kernel = functools.partial(
        _ssd_kernel,
        tile_w=tile_w,
        tiles_per_shard=tiles_per_shard,
        m_fold=m_fold,
        need_mask=need_mask,
        panel_w=panel_w,
        n_acc=n_acc,
    )

    def in_map(s, ri, k):
        # Clamp so a redundant tile (odd tile count split across 2 cores) never
        # indexes past the array; its contribution is zeroed by the mask.
        return (ri, jnp.minimum(s * tiles_per_shard + k, n_tiles - 1))

    def out_map(s, ri, k):
        return (s, ri, 0)

    partial_ssd = pl.pallas_call(
        kernel,
        out_shape=jax.ShapeDtypeStruct((n_shards, padded_rows, lanes_out),
                                       jnp.float32),
        grid_spec=pltpu.PrefetchScalarGridSpec(
            num_scalar_prefetch=0,
            grid=(n_shards, n_row_tiles, tiles_per_shard),
            in_specs=[
                pl.BlockSpec((row_tile, tile_w), in_map),
                pl.BlockSpec((row_tile, tile_w), in_map),
            ],
            out_specs=pl.BlockSpec((1, row_tile, lanes_out), out_map),
        ),
        compiler_params=pltpu.CompilerParams(
            dimension_semantics=("parallel", "parallel", "arbitrary"),
            vmem_limit_bytes=vmem_limit,
        ),
    )(xf, yf)

    # Tiny O(N) epilogue (cross-shard/lane sum, PSNR math, batch mean) in JAX.
    ssd_rows = jnp.sum(partial_ssd, axis=(0, 2))[:rows]      # (rows,)
    ssd = jnp.sum(ssd_rows.reshape(n, r), axis=1)            # (N,) per-sample
    mse = ssd / jnp.float32(m) + jnp.float32(epsilon)
    l = 10.0 * jnp.log10(jnp.float32(value_range) ** 2 / mse)
    return jnp.mean(l)


# --------------------------------------------------------------------------
# Reference + self-test
# --------------------------------------------------------------------------
def psnr_reference(x, y, *, value_range=1.0, epsilon=1e-8):
    n = x.shape[0]
    xf = x.reshape(n, -1).astype(jnp.float32)
    yf = y.reshape(n, -1).astype(jnp.float32)
    mse = jnp.mean((xf - yf) ** 2, axis=1) + epsilon
    l = 10.0 * jnp.log10(value_range ** 2 / mse)
    return jnp.mean(l)


if __name__ == "__main__":
    key = jax.random.PRNGKey(0)
    kx, ky = jax.random.split(key)

    # Main check: (N, C, H, W) consistent with the module's usage.
    x = jax.random.uniform(kx, (2, 4, 16, 16), dtype=jnp.float32)
    y = jax.random.uniform(ky, (2, 4, 16, 16), dtype=jnp.float32)
    out = psnr_pallas(x, y)
    jax.block_until_ready(out)
    ref = psnr_reference(x, y)
    assert jnp.allclose(out, ref, rtol=1e-4, atol=1e-4), (out, ref)

    # Ragged path: non-divisible feature width -> gated in-kernel tail masking.
    x2 = jax.random.uniform(kx, (3, 3, 17, 19), dtype=jnp.float32)
    y2 = jax.random.uniform(ky, (3, 3, 17, 19), dtype=jnp.float32)
    out2 = psnr_pallas(x2, y2)
    jax.block_until_ready(out2)
    ref2 = psnr_reference(x2, y2)
    assert jnp.allclose(out2, ref2, rtol=1e-4, atol=1e-4), (out2, ref2)

    # Narrow-dtype path: bf16 inputs go straight into the kernel (half the HBM
    # traffic, fully packed sublanes); the f32 upcast happens inside.
    x3 = jax.random.uniform(kx, (2, 4, 16, 16), dtype=jnp.float32).astype(jnp.bfloat16)
    y3 = jax.random.uniform(ky, (2, 4, 16, 16), dtype=jnp.float32).astype(jnp.bfloat16)
    out3 = psnr_pallas(x3, y3)
    jax.block_until_ready(out3)
    ref3 = psnr_reference(x3, y3)
    assert jnp.allclose(out3, ref3, rtol=1e-3, atol=1e-3), (out3, ref3)

    print("KERNEL_OK")
</pallas_src>

<mosaic_0001>
module attributes {stable_mosaic.version = 11 : i64} {
  func.func @_ssd_kernel(%arg0: i32, %arg1: i32, %arg2: i32, %arg3: memref<8x256xf32, #tpu.memory_space<vmem>>, %arg4: memref<8x256xf32, #tpu.memory_space<vmem>>, %arg5: memref<1x8x128xf32, #tpu.memory_space<vmem>>) attributes {dimension_semantics = [#tpu.dimension_semantics<parallel>, #tpu.dimension_semantics<parallel>, #tpu.dimension_semantics<arbitrary>], iteration_bounds = array<i64: 1, 1, 1>, scalar_prefetch = 0 : i64, scratch_operands = 0 : i64, tpu.core_type = #tpu.core_type<tc>, window_params = [{transform_indices = @transform_0, window_bounds = array<i64: 8, 256>}, {transform_indices = @transform_1, window_bounds = array<i64: 8, 256>}, {transform_indices = @transform_2, window_bounds = array<i64: 1, 8, 128>}]} {
    %c0_i32 = arith.constant 0 : i32
    %0 = arith.cmpi eq, %arg2, %c0_i32 : i32
    %1 = arith.extui %0 : i1 to i32
    %c0_i32_0 = arith.constant 0 : i32
    %2 = arith.cmpi ne, %1, %c0_i32_0 : i32
    scf.if %2 {
      %cst_11 = arith.constant 0.000000e+00 : f32
      %18 = vector.broadcast %cst_11 : f32 to vector<1x8x128xf32>
      %c0_12 = arith.constant 0 : index
      %c0_13 = arith.constant 0 : index
      %c0_14 = arith.constant 0 : index
      %19 = vector.load %arg5[%c0_12, %c0_13, %c0_14] : memref<1x8x128xf32, #tpu.memory_space<vmem>>, vector<1x8x128xf32>
      tpu.vector_store %arg5[%c0_12, %c0_13, %c0_14], %18 {strides = array<i32>} : memref<1x8x128xf32, #tpu.memory_space<vmem>>, vector<1x8x128xf32>,
    } else {
    }
    %c0 = arith.constant 0 : index
    %c0_1 = arith.constant 0 : index
    %c0_2 = arith.constant 0 : index
    %3 = vector.load %arg5[%c0, %c0_1, %c0_2] : memref<1x8x128xf32, #tpu.memory_space<vmem>>, vector<1x8x128xf32>
    %cst = arith.constant 0.000000e+00 : f32
    %4 = vector.broadcast %cst : f32 to vector<8x128xf32>
    %cst_3 = arith.constant 0.000000e+00 : f32
    %5 = vector.broadcast %cst_3 : f32 to vector<8x128xf32>
    %c0_4 = arith.constant 0 : index
    %c0_5 = arith.constant 0 : index
    %6 = vector.load %arg3[%c0_4, %c0_5] : memref<8x256xf32, #tpu.memory_space<vmem>>, vector<8x256xf32>
    %c0_6 = arith.constant 0 : index
    %c0_7 = arith.constant 0 : index
    %7 = vector.load %arg4[%c0_6, %c0_7] : memref<8x256xf32, #tpu.memory_space<vmem>>, vector<8x256xf32>
    %8 = arith.subf %6, %7 : vector<8x256xf32>
    %9 = arith.mulf %8, %8 : vector<8x256xf32>
    %10 = vector.extract_strided_slice %9 {offsets = [0, 0], sizes = [8, 128], strides = [1, 1]} : vector<8x256xf32> to vector<8x128xf32>
    %11 = arith.addf %4, %10 : vector<8x128xf32>
    %12 = vector.extract_strided_slice %9 {offsets = [0, 128], sizes = [8, 128], strides = [1, 1]} : vector<8x256xf32> to vector<8x128xf32>
    %13 = arith.addf %5, %12 : vector<8x128xf32>
    %14 = arith.addf %11, %13 : vector<8x128xf32>
    %15 = vector.shape_cast %14 : vector<8x128xf32> to vector<1x8x128xf32>
    %16 = arith.addf %3, %15 : vector<1x8x128xf32>
    %c0_8 = arith.constant 0 : index
    %c0_9 = arith.constant 0 : index
    %c0_10 = arith.constant 0 : index
    %17 = vector.load %arg5[%c0_8, %c0_9, %c0_10] : memref<1x8x128xf32, #tpu.memory_space<vmem>>, vector<1x8x128xf32>
    tpu.vector_store %arg5[%c0_8, %c0_9, %c0_10], %16 {strides = array<i32>} : memref<1x8x128xf32, #tpu.memory_space<vmem>>, vector<1x8x128xf32>,
    return
  }
  func.func @transform_0(%arg0: i32, %arg1: i32, %arg2: i32) -> (i32, i32) {
    %c1_i32 = arith.constant 1 : i32
    %0 = arith.muli %arg0, %c1_i32 : i32
    %1 = arith.addi %0, %arg2 : i32
    %c0_i32 = arith.constant 0 : i32
    %2 = arith.minsi %1, %c0_i32 : i32
    %c0_i32_0 = arith.constant 0 : i32
    return %arg1, %2 : i32, i32
  }
  func.func @transform_1(%arg0: i32, %arg1: i32, %arg2: i32) -> (i32, i32) {
    %c1_i32 = arith.constant 1 : i32
    %0 = arith.muli %arg0, %c1_i32 : i32
    %1 = arith.addi %0, %arg2 : i32
    %c0_i32 = arith.constant 0 : i32
    %2 = arith.minsi %1, %c0_i32 : i32
    %c0_i32_0 = arith.constant 0 : i32
    return %arg1, %2 : i32, i32
  }
  func.func @transform_2(%arg0: i32, %arg1: i32, %arg2: i32) -> (i32, i32, i32) {
    %c0_i32 = arith.constant 0 : i32
    %c0_i32_0 = arith.constant 0 : i32
    return %arg0, %arg1, %c0_i32 : i32, i32, i32
  }
}

</mosaic_0001>

<llo_original>
// kernel: tpu_custom_call.1
$region0: #{tpu_custom_call.1}
  #allocation0 [shape = 'u32[]', space=smem, size = 0x4, offset = 0x4, fixed_abs, tag = 'smem constant byte address 0x4 - core index']
  #allocation1 [shape = 'u32[72,128]{1,0:T(1,128)}', space=vmem, size = 0x9000, scoped, tag = 'internal scratch']
  %s0 = inlined_call_operand.hbm [shape: f32[8,256], index: 0, kind: input, shape index: {}]
  %s1 = inlined_call_operand.hbm [shape: f32[8,256], index: 1, kind: input, shape index: {}]
  %s2 = inlined_call_operand.hbm [shape: f32[1,8,128], index: 2, kind: output, shape index: {}]
  %s3 = sld [smem:[#allocation0]]
  $region30: #{tpu_custom_call.1} parent=0
    _
  %s5 = ssub.s32 1, %s3
  %s6 = scalar_select 0, %s5, %s3
  $region1: #{tpu_custom_call.1} parent=0
    #allocation2 [shape = 'u8[8192]{0}', space=vmem, size = 0x2000, scoped, tag = 'input window, operand 0, single buffered']
    #allocation3 [shape = 's32[1]{0}', space=sflag, size = 0x4, scoped, tag = 'scoped memory for tpu_custom_call.1']
    #allocation4 [shape = 's32[1]{0}', space=sflag, size = 0x4, scoped, tag = 'scoped memory for tpu_custom_call.1']
    #allocation5 [shape = 'u8[8192]{0}', space=vmem, size = 0x2000, scoped, tag = 'input window, operand 1, single buffered']
    #allocation6 [shape = 's32[1]{0}', space=sflag, size = 0x4, scoped, tag = 'scoped memory for tpu_custom_call.1']
    #allocation7 [shape = 'u8[4096]{0}', space=vmem, size = 0x1000, scoped, tag = 'output window, operand 0, single buffered']
    %7 = vsyncpa [#allocation3], 0
    %8 = vsyncpa [#allocation6], 0
    %9 = vsyncpa [#allocation4], 0
    // Predicated region
    $region2: #{tpu_custom_call.1} parent=1 // pred_check
      _
    $region3: #{tpu_custom_call.1} parent=1 // pred_check_branch
      %11 = sbr.rel (0) target = $region5
    $region4: #{tpu_custom_call.1} parent=1 // pred_region
      %s12 = sadd.s32 0, 0
      %p13 = scmp.lt.s32.totalorder %s12, 0
      %s14 = scalar_select %p13, %s12, 0
      %s15 = smul.u32 2, %s14
      %17 = vsyncadd [#allocation3], 0
      %s18 = smul.addr %s15, 8
      %s19 = scalar_lea.hbm %s0, %s18
      %s21 = sshll.u32 %s19, 4
      %s22 = int_to_ptr.hbm [resolvable:$true] %s21
      %s23 = sshll.u32 [#allocation2], 4
      %s24 = int_to_ptr.vmem [resolvable:$true] %s23
      %26 = dma.hbm_to_vmem [thread:$0]  %s22, 256, %s24, [#allocation3]
    $region5: #{tpu_custom_call.1} parent=1 // pred_fallthru
      _
    // Predicated region
    $region6: #{tpu_custom_call.1} parent=1 // pred_check
      _
    $region7: #{tpu_custom_call.1} parent=1 // pred_check_branch
      %28 = sbr.rel (0) target = $region9
    $region8: #{tpu_custom_call.1} parent=1 // pred_region
      %s29 = sadd.s32 0, 0
      %p30 = scmp.lt.s32.totalorder %s29, 0
      %s31 = scalar_select %p30, %s29, 0
      %s32 = smul.u32 2, %s31
      %34 = vsyncadd [#allocation6], 0
      %s35 = smul.addr %s32, 8
      %s36 = scalar_lea.hbm %s1, %s35
      %s38 = sshll.u32 %s36, 4
      %s39 = int_to_ptr.hbm [resolvable:$true] %s38
      %s40 = sshll.u32 [#allocation5], 4
      %s41 = int_to_ptr.vmem [resolvable:$true] %s40
      %43 = dma.hbm_to_vmem [thread:$0]  %s39, 256, %s41, [#allocation6]
    $region9: #{tpu_custom_call.1} parent=1 // pred_fallthru
      _
    // Predicated region
    $region10: #{tpu_custom_call.1} parent=1 // pred_check
      _
    $region11: #{tpu_custom_call.1} parent=1 // pred_check_branch
      %45 = sbr.rel (0) target = $region13
    $region12: #{tpu_custom_call.1} parent=1 // pred_region
      %47 = dma.done [#allocation3], 256
    $region13: #{tpu_custom_call.1} parent=1 // pred_fallthru
      _
    // Predicated region
    $region14: #{tpu_custom_call.1} parent=1 // pred_check
      _
    $region15: #{tpu_custom_call.1} parent=1 // pred_check_branch
      %49 = sbr.rel (0) target = $region17
    $region16: #{tpu_custom_call.1} parent=1 // pred_region
      %51 = dma.done [#allocation6], 256
    $region17: #{tpu_custom_call.1} parent=1 // pred_fallthru
      _
    %s52 = sadd.s32 0, 0
    %p53 = scmp.lt.s32.totalorder %s52, 0
    %s54 = scalar_select %p53, %s52, 0
    %s55 = smul.u32 2, %s54
    %s56 = sadd.s32 0, 0
    %p57 = scmp.lt.s32.totalorder %s56, 0
    %s58 = scalar_select %p57, %s56, 0
    %s59 = smul.u32 2, %s58
    %p60 = scmp.eq.s32.totalorder 0, 0
    // Predicated region
    $region18: #{tpu_custom_call.1} parent=1 // pred_check
      %p61 = pneg %p60
    $region19: #{tpu_custom_call.1} parent=1 // pred_check_branch
      %63 = sbr.rel (%p61) target = $region21
    $region20: #{tpu_custom_call.1} parent=1 // pred_region
      %64 = vst [vmem:[#allocation7] sm:$0xff] 0.0
    $region21: #{tpu_custom_call.1} parent=1 // pred_fallthru
      _
    %v65 = vld [vmem:[#allocation7] sm:$0xff]
    %v66 = vld [vmem:[#allocation2] sm:$0xff]
    %v67 = vld [vmem:[#allocation2 + $0x8] sm:$0xff]
    %v68 = vld [vmem:[#allocation5] sm:$0xff]
    %v69 = vld [vmem:[#allocation5 + $0x8] sm:$0xff]
    %v70 = vsub.f32 %v66, %v68
    %v71 = vsub.f32 %v67, %v69
    %v72 = vmul.f32 %v70, %v70
    %v73 = vmul.f32 %v71, %v71
    %v74 = vadd.f32 %v72, 0.0
    %v75 = vadd.f32 %v73, 0.0
    %v76 = vadd.f32 %v74, %v75
    %v77 = vadd.f32 %v65, %v76
    %78 = vst [vmem:[#allocation7] sm:$0xff] %v77
    // Predicated region
    $region22: #{tpu_custom_call.1} parent=1 // pred_check
      _
    $region23: #{tpu_custom_call.1} parent=1 // pred_check_branch
      %80 = sbr.rel (0) target = $region25
    $region24: #{tpu_custom_call.1} parent=1 // pred_region
      %82 = vsyncadd [#allocation4], 0
      %s84 = sshll.u32 [#allocation7], 4
      %s85 = int_to_ptr.vmem [resolvable:$true] %s84
      %s86 = sshll.u32 %s2, 4
      %s87 = int_to_ptr.hbm [resolvable:$true] %s86
      %89 = dma.vmem_to_hbm [thread:$0]  %s85, 128, %s87, [#allocation4]
    $region25: #{tpu_custom_call.1} parent=1 // pred_fallthru
      _
    // Predicated region
    $region26: #{tpu_custom_call.1} parent=1 // pred_check
      _
    $region27: #{tpu_custom_call.1} parent=1 // pred_check_branch
      %91 = sbr.rel (0) target = $region29
    $region28: #{tpu_custom_call.1} parent=1 // pred_region
      %93 = dma.done [#allocation4], 128
    $region29: #{tpu_custom_call.1} parent=1 // pred_fallthru
      _
    %94 = vsyncpa [#allocation3], 1
    %95 = vsyncpa [#allocation6], 1
    %96 = vsyncpa [#allocation4], 1

</llo_original>
